<compile_context>
chip_gen: v6e
topology: v6e:2x2x1
jax: 0.10.0
libtpu: 0.0.40
codegen_flags: <defaults>
</compile_context>

<pallas_src>
import numpy as np
import jax
import jax.numpy as jnp
from jax.experimental import pallas as pl
from jax.experimental.pallas import tpu as pltpu

BN_EPS = 1e-5
THRESHOLD = 0.2            # similarity-feature threshold
CONTEXT_THRESHOLD = 0.25   # context-feature threshold

# Feature rows in the packed (8, R, 128) slab.
ROW_JARO, ROW_JACC, ROW_LEV, ROW_SPACY, ROW_LOOKUP, ROW_CTX, ROW_EXACT = range(7)
# row 7 is dead padding.

_TILE_MAX_R = 2048     # 2048 * 128 lanes/step -> 8 MiB f32 input block per step
_MIN_GRID_STEPS = 4    # keep several steps so v7x's 2 TCs both get work


def _context_lnn_kernel(x_ref, scale_ref, shift_ref,
                        or_w_ref, or_b_ref, and_w_ref, and_b_ref,
                        out_ref):
    """Hot path: folded-BN affine, thresholding, 3 OR gates, 2 AND gates.

    x_ref:     (8, TILE_R, 128) VMEM — row = feature, (TILE_R, 128) = batch
    scale_ref: (6,) SMEM — gamma * rsqrt(var + eps) per BN'ed feature
    shift_ref: (6,) SMEM — beta - mean * scale per BN'ed feature
    or_w/or_b/and_w/and_b: SMEM gate parameters
    out_ref:   (TILE_R, 128) VMEM — dense output tile
    """
    def bn(row):
        # Static first-axis index -> dense (TILE_R, 128) tile; SMEM scalars
        # broadcast into the VPU FMA for free.
        return x_ref[row] * scale_ref[row] + shift_ref[row]

    jaro = bn(ROW_JARO)
    jacc = bn(ROW_JACC)
    lev = bn(ROW_LEV)
    lookup = bn(ROW_LOOKUP)
    ctx = bn(ROW_CTX)
    exact = x_ref[ROW_EXACT]          # passes through BN untouched
    # ROW_SPACY is never used -> never loaded / normalized.

    cmask = jnp.where(ctx >= CONTEXT_THRESHOLD, 1.0, 0.0)
    zeros = jnp.zeros_like(jacc)
    jacc = jnp.where(jacc >= THRESHOLD, jacc, zeros) * cmask
    lev = jnp.where(lev >= THRESHOLD, lev, zeros) * cmask
    jaro = jnp.where(jaro >= THRESHOLD, jaro, zeros) * cmask

    # Chained binary weighted-Lukasiewicz ORs:
    #   OR(a, b) = clip(1 - beta + w0*a + w1*b, 0, 1)
    d = exact
    feats = (jacc, lev, jaro)
    for i in range(3):
        d = jnp.clip(1.0 - or_b_ref[i]
                     + or_w_ref[i, 0] * d + or_w_ref[i, 1] * feats[i],
                     0.0, 1.0)

    # AND(a, b) = clip(beta - w0*(1-a) - w1*(1-b), 0, 1)
    r = jnp.clip(and_b_ref[0]
                 - and_w_ref[0, 0] * (1.0 - lookup)
                 - and_w_ref[0, 1] * (1.0 - d),
                 0.0, 1.0)
    y = jnp.clip(and_b_ref[1]
                 - and_w_ref[1, 0] * (1.0 - r)
                 - and_w_ref[1, 1] * (1.0 - ctx),
                 0.0, 1.0)
    out_ref[...] = y                                             # dense store


def _round_up(a, b):
    return -(-a // b) * b


def _choose_tile_r(r):
    """Pick a tile that amortizes per-step overhead but keeps >=~4 grid steps
    (v7x 2-TC sharding / DMA overlap) and a portable VMEM footprint."""
    t = min(_TILE_MAX_R, max(8, -(-r // _MIN_GRID_STEPS)))
    return _round_up(t, 8)


def context_lnn_forward(x, exact_match, params, *, tile_r=None):
    """x: (N, 6) f32 similarity/lookup/context scores.
    exact_match: (N, 1) f32 host-computed exact-match feature.
    Returns yhat: (N, 1) f32 (same shape as the torch module)."""
    n = x.shape[0]
    x = x.astype(jnp.float32)

    # --- BatchNorm1d training-mode statistics over the FULL batch (wrapper) ---
    mean = jnp.mean(x, axis=0)                                   # (6,)
    var = jnp.mean(jnp.square(x - mean), axis=0)                 # biased variance
    scale = params["bn_gamma"] * jax.lax.rsqrt(var + BN_EPS)     # (6,)
    shift = params["bn_beta"] - mean * scale                     # (6,)

    # --- Tiling geometry ------------------------------------------------------
    r = _round_up(n, 128) // 128            # number of 128-lane batch rows
    if tile_r is None:
        tile_r = _choose_tile_r(r)
    tile_r = _round_up(max(tile_r, 8), 8)
    r_pad = _round_up(r, tile_r)
    n_pad = r_pad * 128

    # --- Cheap repack: one concat + one pad + free reshape --------------------
    slab = jnp.concatenate(
        [x.T, exact_match.reshape(1, n).astype(jnp.float32)], axis=0)   # (7, n)
    slab = jnp.pad(slab, ((0, 1), (0, n_pad - n)))                      # (8, n_pad)
    xt = slab.reshape(8, r_pad, 128)

    grid = (r_pad // tile_r,)
    vmem = pltpu.MemorySpace.VMEM
    smem = pltpu.MemorySpace.SMEM

    out = pl.pallas_call(
        _context_lnn_kernel,
        out_shape=jax.ShapeDtypeStruct((r_pad, 128), jnp.float32),
        grid=grid,
        in_specs=[
            pl.BlockSpec((8, tile_r, 128), lambda i: (0, i, 0),
                         memory_space=vmem),                            # slab
            pl.BlockSpec(memory_space=smem),                            # scale (6,)
            pl.BlockSpec(memory_space=smem),                            # shift (6,)
            pl.BlockSpec(memory_space=smem),                            # or_w  (3,2)
            pl.BlockSpec(memory_space=smem),                            # or_b  (3,)
            pl.BlockSpec(memory_space=smem),                            # and_w (2,2)
            pl.BlockSpec(memory_space=smem),                            # and_b (2,)
        ],
        out_specs=pl.BlockSpec((tile_r, 128), lambda i: (i, 0),
                               memory_space=vmem),
        compiler_params=pltpu.CompilerParams(
            # Tiles independent (BN stats precomputed) -> megacore-shardable.
            dimension_semantics=("parallel",),
            # ~19 MiB double-buffered at TILE_R=2048: raise above v5e's 16 MiB
            # default scoped VMEM, stay well under v7x's 64 MiB physical.
            vmem_limit_bytes=40 * 1024 * 1024),
    )(xt, scale, shift,
      params["or_w"], params["or_b"], params["and_w"], params["and_b"])

    # Padded lanes carry junk-through-gates values but are sliced off here.
    return out.reshape(n_pad)[:n].reshape(n, 1)


def init_params():
    """Deterministic parameter init matching the module __init__ shapes."""
    return {
        # BatchNorm1d(6, affine=True): gamma=1, beta=0 at init
        "bn_gamma": jnp.ones((6,), jnp.float32),
        "bn_beta": jnp.zeros((6,), jnp.float32),
        # 3 binary OR gates (sim_disjunction_or_ops): w=1, beta=1
        "or_w": jnp.ones((3, 2), jnp.float32),
        "or_b": jnp.ones((3,), jnp.float32),
        # 2 binary AND gates (predicate_and_ops): w=1, beta=1
        "and_w": jnp.ones((2, 2), jnp.float32),
        "and_b": jnp.ones((2,), jnp.float32),
    }


if __name__ == "__main__":
    # NOTE: for a real N=8 batch, plain XLA beats a custom kernel (launch
    # overhead dominates); this tiny run is just a correctness smoke test —
    # the kernel path is intended for N in the hundreds of thousands+.
    key = jax.random.PRNGKey(0)
    N = 8  # batch of candidate (mention, label) pairs

    # 6 score features: jw, jacc, lev, spacy, normalized_ref, normalized_ctx
    x = jax.random.uniform(key, (N, 6), dtype=jnp.float32)

    # Host-side string glue (same as the torch/numpy code in forward()).
    mention_labels = [
        "apple; apple", "banana; orange", "paris; paris", "rome; milan",
        "tokyo; tokyo", "delhi; mumbai", "cairo; cairo", "lima; quito",
    ]
    mentions = np.array([m.split(";")[0].strip().lower() for m in mention_labels])
    labels = np.array([m.split(";")[1].strip().lower() for m in mention_labels])
    exact_match = jnp.asarray(
        (mentions == labels).astype(np.float32).reshape(-1, 1))

    params = init_params()
    yhat = context_lnn_forward(x, exact_match, params)
    yhat = jax.block_until_ready(yhat)
    assert yhat.shape == (N, 1) and yhat.dtype == jnp.float32
    assert bool(jnp.all(jnp.isfinite(yhat)))
    assert bool(jnp.all((yhat >= 0.0) & (yhat <= 1.0)))  # gate outputs are clamped
    print("KERNEL_OK")
</pallas_src>

<mosaic_0001>
module attributes {stable_mosaic.version = 11 : i64} {
  func.func @_context_lnn_kernel(%arg0: i32, %arg1: memref<8x8x128xf32, #tpu.memory_space<vmem>>, %arg2: memref<6xf32, #tpu.memory_space<smem>>, %arg3: memref<6xf32, #tpu.memory_space<smem>>, %arg4: memref<3x2xf32, #tpu.memory_space<smem>>, %arg5: memref<3xf32, #tpu.memory_space<smem>>, %arg6: memref<2x2xf32, #tpu.memory_space<smem>>, %arg7: memref<2xf32, #tpu.memory_space<smem>>, %arg8: memref<8x128xf32, #tpu.memory_space<vmem>>) attributes {dimension_semantics = [#tpu.dimension_semantics<parallel>], iteration_bounds = array<i64: 1>, scalar_prefetch = 0 : i64, scratch_operands = 0 : i64, tpu.core_type = #tpu.core_type<tc>, window_params = [{transform_indices = @transform_0, window_bounds = array<i64: 8, 8, 128>}, {transform_indices = @transform_1, window_bounds = array<i64: 6>}, {transform_indices = @transform_2, window_bounds = array<i64: 6>}, {transform_indices = @transform_3, window_bounds = array<i64: 3, 2>}, {transform_indices = @transform_4, window_bounds = array<i64: 3>}, {transform_indices = @transform_5, window_bounds = array<i64: 2, 2>}, {transform_indices = @transform_6, window_bounds = array<i64: 2>}, {transform_indices = @transform_7, window_bounds = array<i64: 8, 128>}]} {
    %c0 = arith.constant 0 : index
    %c0_0 = arith.constant 0 : index
    %c0_1 = arith.constant 0 : index
    %0 = vector.load %arg1[%c0, %c0_0, %c0_1] : memref<8x8x128xf32, #tpu.memory_space<vmem>>, vector<1x8x128xf32>
    %1 = vector.shape_cast %0 : vector<1x8x128xf32> to vector<8x128xf32>
    %c0_2 = arith.constant 0 : index
    %2 = memref.load %arg2[%c0_2] : memref<6xf32, #tpu.memory_space<smem>>
    %3 = vector.broadcast %2 : f32 to vector<8x128xf32>
    %4 = arith.mulf %1, %3 : vector<8x128xf32>
    %c0_3 = arith.constant 0 : index
    %5 = memref.load %arg3[%c0_3] : memref<6xf32, #tpu.memory_space<smem>>
    %6 = vector.broadcast %5 : f32 to vector<8x128xf32>
    %7 = arith.addf %4, %6 : vector<8x128xf32>
    %c1 = arith.constant 1 : index
    %c0_4 = arith.constant 0 : index
    %c0_5 = arith.constant 0 : index
    %8 = vector.load %arg1[%c1, %c0_4, %c0_5] : memref<8x8x128xf32, #tpu.memory_space<vmem>>, vector<1x8x128xf32>
    %9 = vector.shape_cast %8 : vector<1x8x128xf32> to vector<8x128xf32>
    %c1_6 = arith.constant 1 : index
    %10 = memref.load %arg2[%c1_6] : memref<6xf32, #tpu.memory_space<smem>>
    %11 = vector.broadcast %10 : f32 to vector<8x128xf32>
    %12 = arith.mulf %9, %11 : vector<8x128xf32>
    %c1_7 = arith.constant 1 : index
    %13 = memref.load %arg3[%c1_7] : memref<6xf32, #tpu.memory_space<smem>>
    %14 = vector.broadcast %13 : f32 to vector<8x128xf32>
    %15 = arith.addf %12, %14 : vector<8x128xf32>
    %c2 = arith.constant 2 : index
    %c0_8 = arith.constant 0 : index
    %c0_9 = arith.constant 0 : index
    %16 = vector.load %arg1[%c2, %c0_8, %c0_9] : memref<8x8x128xf32, #tpu.memory_space<vmem>>, vector<1x8x128xf32>
    %17 = vector.shape_cast %16 : vector<1x8x128xf32> to vector<8x128xf32>
    %c2_10 = arith.constant 2 : index
    %18 = memref.load %arg2[%c2_10] : memref<6xf32, #tpu.memory_space<smem>>
    %19 = vector.broadcast %18 : f32 to vector<8x128xf32>
    %20 = arith.mulf %17, %19 : vector<8x128xf32>
    %c2_11 = arith.constant 2 : index
    %21 = memref.load %arg3[%c2_11] : memref<6xf32, #tpu.memory_space<smem>>
    %22 = vector.broadcast %21 : f32 to vector<8x128xf32>
    %23 = arith.addf %20, %22 : vector<8x128xf32>
    %c4 = arith.constant 4 : index
    %c0_12 = arith.constant 0 : index
    %c0_13 = arith.constant 0 : index
    %24 = vector.load %arg1[%c4, %c0_12, %c0_13] : memref<8x8x128xf32, #tpu.memory_space<vmem>>, vector<1x8x128xf32>
    %25 = vector.shape_cast %24 : vector<1x8x128xf32> to vector<8x128xf32>
    %c4_14 = arith.constant 4 : index
    %26 = memref.load %arg2[%c4_14] : memref<6xf32, #tpu.memory_space<smem>>
    %27 = vector.broadcast %26 : f32 to vector<8x128xf32>
    %28 = arith.mulf %25, %27 : vector<8x128xf32>
    %c4_15 = arith.constant 4 : index
    %29 = memref.load %arg3[%c4_15] : memref<6xf32, #tpu.memory_space<smem>>
    %30 = vector.broadcast %29 : f32 to vector<8x128xf32>
    %31 = arith.addf %28, %30 : vector<8x128xf32>
    %c5 = arith.constant 5 : index
    %c0_16 = arith.constant 0 : index
    %c0_17 = arith.constant 0 : index
    %32 = vector.load %arg1[%c5, %c0_16, %c0_17] : memref<8x8x128xf32, #tpu.memory_space<vmem>>, vector<1x8x128xf32>
    %33 = vector.shape_cast %32 : vector<1x8x128xf32> to vector<8x128xf32>
    %c5_18 = arith.constant 5 : index
    %34 = memref.load %arg2[%c5_18] : memref<6xf32, #tpu.memory_space<smem>>
    %35 = vector.broadcast %34 : f32 to vector<8x128xf32>
    %36 = arith.mulf %33, %35 : vector<8x128xf32>
    %c5_19 = arith.constant 5 : index
    %37 = memref.load %arg3[%c5_19] : memref<6xf32, #tpu.memory_space<smem>>
    %38 = vector.broadcast %37 : f32 to vector<8x128xf32>
    %39 = arith.addf %36, %38 : vector<8x128xf32>
    %c6 = arith.constant 6 : index
    %c0_20 = arith.constant 0 : index
    %c0_21 = arith.constant 0 : index
    %40 = vector.load %arg1[%c6, %c0_20, %c0_21] : memref<8x8x128xf32, #tpu.memory_space<vmem>>, vector<1x8x128xf32>
    %41 = vector.shape_cast %40 : vector<1x8x128xf32> to vector<8x128xf32>
    %cst = arith.constant 2.500000e-01 : f32
    %42 = vector.broadcast %cst : f32 to vector<8x128xf32>
    %43 = arith.cmpf oge, %39, %42 : vector<8x128xf32>
    %cst_22 = arith.constant 1.000000e+00 : f32
    %cst_23 = arith.constant 0.000000e+00 : f32
    %44 = vector.broadcast %cst_22 : f32 to vector<8x128xf32>
    %45 = vector.broadcast %cst_23 : f32 to vector<8x128xf32>
    %46 = arith.select %43, %44, %45 : vector<8x128xi1>, vector<8x128xf32>
    %cst_24 = arith.constant 0.000000e+00 : f32
    %47 = vector.broadcast %cst_24 : f32 to vector<8x128xf32>
    %cst_25 = arith.constant 2.000000e-01 : f32
    %48 = vector.broadcast %cst_25 : f32 to vector<8x128xf32>
    %49 = arith.cmpf oge, %15, %48 : vector<8x128xf32>
    %50 = arith.select %49, %15, %47 : vector<8x128xi1>, vector<8x128xf32>
    %51 = arith.mulf %50, %46 : vector<8x128xf32>
    %cst_26 = arith.constant 2.000000e-01 : f32
    %52 = vector.broadcast %cst_26 : f32 to vector<8x128xf32>
    %53 = arith.cmpf oge, %23, %52 : vector<8x128xf32>
    %54 = arith.select %53, %23, %47 : vector<8x128xi1>, vector<8x128xf32>
    %55 = arith.mulf %54, %46 : vector<8x128xf32>
    %cst_27 = arith.constant 2.000000e-01 : f32
    %56 = vector.broadcast %cst_27 : f32 to vector<8x128xf32>
    %57 = arith.cmpf oge, %7, %56 : vector<8x128xf32>
    %58 = arith.select %57, %7, %47 : vector<8x128xi1>, vector<8x128xf32>
    %59 = arith.mulf %58, %46 : vector<8x128xf32>
    %c0_28 = arith.constant 0 : index
    %60 = memref.load %arg5[%c0_28] : memref<3xf32, #tpu.memory_space<smem>>
    %cst_29 = arith.constant 1.000000e+00 : f32
    %61 = arith.subf %cst_29, %60 : f32
    %c0_30 = arith.constant 0 : index
    %c0_31 = arith.constant 0 : index
    %62 = memref.load %arg4[%c0_30, %c0_31] : memref<3x2xf32, #tpu.memory_space<smem>>
    %63 = vector.broadcast %62 : f32 to vector<8x128xf32>
    %64 = arith.mulf %63, %41 : vector<8x128xf32>
    %65 = vector.broadcast %61 : f32 to vector<8x128xf32>
    %66 = arith.addf %65, %64 : vector<8x128xf32>
    %c0_32 = arith.constant 0 : index
    %c1_33 = arith.constant 1 : index
    %67 = memref.load %arg4[%c0_32, %c1_33] : memref<3x2xf32, #tpu.memory_space<smem>>
    %68 = vector.broadcast %67 : f32 to vector<8x128xf32>
    %69 = arith.mulf %68, %51 : vector<8x128xf32>
    %70 = arith.addf %66, %69 : vector<8x128xf32>
    %cst_34 = arith.constant 0.000000e+00 : f32
    %cst_35 = arith.constant 1.000000e+00 : f32
    %71 = vector.broadcast %cst_34 : f32 to vector<8x128xf32>
    %72 = arith.maximumf %71, %70 : vector<8x128xf32>
    %73 = vector.broadcast %cst_35 : f32 to vector<8x128xf32>
    %74 = arith.minimumf %73, %72 : vector<8x128xf32>
    %c1_36 = arith.constant 1 : index
    %75 = memref.load %arg5[%c1_36] : memref<3xf32, #tpu.memory_space<smem>>
    %cst_37 = arith.constant 1.000000e+00 : f32
    %76 = arith.subf %cst_37, %75 : f32
    %c1_38 = arith.constant 1 : index
    %c0_39 = arith.constant 0 : index
    %77 = memref.load %arg4[%c1_38, %c0_39] : memref<3x2xf32, #tpu.memory_space<smem>>
    %78 = vector.broadcast %77 : f32 to vector<8x128xf32>
    %79 = arith.mulf %78, %74 : vector<8x128xf32>
    %80 = vector.broadcast %76 : f32 to vector<8x128xf32>
    %81 = arith.addf %80, %79 : vector<8x128xf32>
    %c1_40 = arith.constant 1 : index
    %c1_41 = arith.constant 1 : index
    %82 = memref.load %arg4[%c1_40, %c1_41] : memref<3x2xf32, #tpu.memory_space<smem>>
    %83 = vector.broadcast %82 : f32 to vector<8x128xf32>
    %84 = arith.mulf %83, %55 : vector<8x128xf32>
    %85 = arith.addf %81, %84 : vector<8x128xf32>
    %cst_42 = arith.constant 0.000000e+00 : f32
    %cst_43 = arith.constant 1.000000e+00 : f32
    %86 = vector.broadcast %cst_42 : f32 to vector<8x128xf32>
    %87 = arith.maximumf %86, %85 : vector<8x128xf32>
    %88 = vector.broadcast %cst_43 : f32 to vector<8x128xf32>
    %89 = arith.minimumf %88, %87 : vector<8x128xf32>
    %c2_44 = arith.constant 2 : index
    %90 = memref.load %arg5[%c2_44] : memref<3xf32, #tpu.memory_space<smem>>
    %cst_45 = arith.constant 1.000000e+00 : f32
    %91 = arith.subf %cst_45, %90 : f32
    %c2_46 = arith.constant 2 : index
    %c0_47 = arith.constant 0 : index
    %92 = memref.load %arg4[%c2_46, %c0_47] : memref<3x2xf32, #tpu.memory_space<smem>>
    %93 = vector.broadcast %92 : f32 to vector<8x128xf32>
    %94 = arith.mulf %93, %89 : vector<8x128xf32>
    %95 = vector.broadcast %91 : f32 to vector<8x128xf32>
    %96 = arith.addf %95, %94 : vector<8x128xf32>
    %c2_48 = arith.constant 2 : index
    %c1_49 = arith.constant 1 : index
    %97 = memref.load %arg4[%c2_48, %c1_49] : memref<3x2xf32, #tpu.memory_space<smem>>
    %98 = vector.broadcast %97 : f32 to vector<8x128xf32>
    %99 = arith.mulf %98, %59 : vector<8x128xf32>
    %100 = arith.addf %96, %99 : vector<8x128xf32>
    %cst_50 = arith.constant 0.000000e+00 : f32
    %cst_51 = arith.constant 1.000000e+00 : f32
    %101 = vector.broadcast %cst_50 : f32 to vector<8x128xf32>
    %102 = arith.maximumf %101, %100 : vector<8x128xf32>
    %103 = vector.broadcast %cst_51 : f32 to vector<8x128xf32>
    %104 = arith.minimumf %103, %102 : vector<8x128xf32>
    %c0_52 = arith.constant 0 : index
    %105 = memref.load %arg7[%c0_52] : memref<2xf32, #tpu.memory_space<smem>>
    %c0_53 = arith.constant 0 : index
    %c0_54 = arith.constant 0 : index
    %106 = memref.load %arg6[%c0_53, %c0_54] : memref<2x2xf32, #tpu.memory_space<smem>>
    %cst_55 = arith.constant 1.000000e+00 : f32
    %107 = vector.broadcast %cst_55 : f32 to vector<8x128xf32>
    %108 = arith.subf %107, %31 : vector<8x128xf32>
    %109 = vector.broadcast %106 : f32 to vector<8x128xf32>
    %110 = arith.mulf %109, %108 : vector<8x128xf32>
    %111 = vector.broadcast %105 : f32 to vector<8x128xf32>
    %112 = arith.subf %111, %110 : vector<8x128xf32>
    %c0_56 = arith.constant 0 : index
    %c1_57 = arith.constant 1 : index
    %113 = memref.load %arg6[%c0_56, %c1_57] : memref<2x2xf32, #tpu.memory_space<smem>>
    %cst_58 = arith.constant 1.000000e+00 : f32
    %114 = vector.broadcast %cst_58 : f32 to vector<8x128xf32>
    %115 = arith.subf %114, %104 : vector<8x128xf32>
    %116 = vector.broadcast %113 : f32 to vector<8x128xf32>
    %117 = arith.mulf %116, %115 : vector<8x128xf32>
    %118 = arith.subf %112, %117 : vector<8x128xf32>
    %cst_59 = arith.constant 0.000000e+00 : f32
    %cst_60 = arith.constant 1.000000e+00 : f32
    %119 = vector.broadcast %cst_59 : f32 to vector<8x128xf32>
    %120 = arith.maximumf %119, %118 : vector<8x128xf32>
    %121 = vector.broadcast %cst_60 : f32 to vector<8x128xf32>
    %122 = arith.minimumf %121, %120 : vector<8x128xf32>
    %c1_61 = arith.constant 1 : index
    %123 = memref.load %arg7[%c1_61] : memref<2xf32, #tpu.memory_space<smem>>
    %c1_62 = arith.constant 1 : index
    %c0_63 = arith.constant 0 : index
    %124 = memref.load %arg6[%c1_62, %c0_63] : memref<2x2xf32, #tpu.memory_space<smem>>
    %cst_64 = arith.constant 1.000000e+00 : f32
    %125 = vector.broadcast %cst_64 : f32 to vector<8x128xf32>
    %126 = arith.subf %125, %122 : vector<8x128xf32>
    %127 = vector.broadcast %124 : f32 to vector<8x128xf32>
    %128 = arith.mulf %127, %126 : vector<8x128xf32>
    %129 = vector.broadcast %123 : f32 to vector<8x128xf32>
    %130 = arith.subf %129, %128 : vector<8x128xf32>
    %c1_65 = arith.constant 1 : index
    %c1_66 = arith.constant 1 : index
    %131 = memref.load %arg6[%c1_65, %c1_66] : memref<2x2xf32, #tpu.memory_space<smem>>
    %cst_67 = arith.constant 1.000000e+00 : f32
    %132 = vector.broadcast %cst_67 : f32 to vector<8x128xf32>
    %133 = arith.subf %132, %39 : vector<8x128xf32>
    %134 = vector.broadcast %131 : f32 to vector<8x128xf32>
    %135 = arith.mulf %134, %133 : vector<8x128xf32>
    %136 = arith.subf %130, %135 : vector<8x128xf32>
    %cst_68 = arith.constant 0.000000e+00 : f32
    %cst_69 = arith.constant 1.000000e+00 : f32
    %137 = vector.broadcast %cst_68 : f32 to vector<8x128xf32>
    %138 = arith.maximumf %137, %136 : vector<8x128xf32>
    %139 = vector.broadcast %cst_69 : f32 to vector<8x128xf32>
    %140 = arith.minimumf %139, %138 : vector<8x128xf32>
    %c0_70 = arith.constant 0 : index
    %c0_71 = arith.constant 0 : index
    %141 = vector.load %arg8[%c0_70, %c0_71] : memref<8x128xf32, #tpu.memory_space<vmem>>, vector<8x128xf32>
    tpu.vector_store %arg8[%c0_70, %c0_71], %140 {strides = array<i32>} : memref<8x128xf32, #tpu.memory_space<vmem>>, vector<8x128xf32>,
    return
  }
  func.func @transform_0(%arg0: i32) -> (i32, i32, i32) {
    %c0_i32 = arith.constant 0 : i32
    %c0_i32_0 = arith.constant 0 : i32
    %c0_i32_1 = arith.constant 0 : i32
    return %c0_i32, %arg0, %c0_i32_0 : i32, i32, i32
  }
  func.func @transform_1(%arg0: i32) -> i32 {
    %c0_i32 = arith.constant 0 : i32
    %c0_i32_0 = arith.constant 0 : i32
    return %c0_i32 : i32
  }
  func.func @transform_2(%arg0: i32) -> i32 {
    %c0_i32 = arith.constant 0 : i32
    %c0_i32_0 = arith.constant 0 : i32
    return %c0_i32 : i32
  }
  func.func @transform_3(%arg0: i32) -> (i32, i32) {
    %c0_i32 = arith.constant 0 : i32
    %c0_i32_0 = arith.constant 0 : i32
    %c0_i32_1 = arith.constant 0 : i32
    return %c0_i32, %c0_i32_0 : i32, i32
  }
  func.func @transform_4(%arg0: i32) -> i32 {
    %c0_i32 = arith.constant 0 : i32
    %c0_i32_0 = arith.constant 0 : i32
    return %c0_i32 : i32
  }
  func.func @transform_5(%arg0: i32) -> (i32, i32) {
    %c0_i32 = arith.constant 0 : i32
    %c0_i32_0 = arith.constant 0 : i32
    %c0_i32_1 = arith.constant 0 : i32
    return %c0_i32, %c0_i32_0 : i32, i32
  }
  func.func @transform_6(%arg0: i32) -> i32 {
    %c0_i32 = arith.constant 0 : i32
    %c0_i32_0 = arith.constant 0 : i32
    return %c0_i32 : i32
  }
  func.func @transform_7(%arg0: i32) -> (i32, i32) {
    %c0_i32 = arith.constant 0 : i32
    %c0_i32_0 = arith.constant 0 : i32
    return %arg0, %c0_i32 : i32, i32
  }
}

</mosaic_0001>

<llo_original>
// kernel: tpu_custom_call.1
$region0: #{tpu_custom_call.1}
  #allocation0 [shape = 'u32[]', space=smem, size = 0x4, offset = 0x4, fixed_abs, tag = 'smem constant byte address 0x4 - core index']
  #allocation1 [shape = 'u32[144,128]{1,0:T(1,128)}', space=vmem, size = 0x12000, scoped, tag = 'internal scratch']
  %s0 = inlined_call_operand.hbm [shape: f32[8,8,128], index: 0, kind: input, shape index: {}]
  %s1 = inlined_call_operand.vmem [shape: f32[6], index: 1, kind: input, shape index: {}]
  %s2 = inlined_call_operand.vmem [shape: f32[6], index: 2, kind: input, shape index: {}]
  %s3 = inlined_call_operand.vmem [shape: f32[3,2], index: 3, kind: input, shape index: {}]
  %s4 = inlined_call_operand.vmem [shape: f32[3], index: 4, kind: input, shape index: {}]
  %s5 = inlined_call_operand.vmem [shape: f32[2,2], index: 5, kind: input, shape index: {}]
  %s6 = inlined_call_operand.vmem [shape: f32[2], index: 6, kind: input, shape index: {}]
  %s7 = inlined_call_operand.hbm [shape: f32[8,128], index: 7, kind: output, shape index: {}]
  %s8 = sld [smem:[#allocation0]]
  $region66: #{tpu_custom_call.1} parent=0
    _
  %s10 = ssub.s32 1, %s8
  %s11 = scalar_select 0, %s10, %s8
  $region1: #{tpu_custom_call.1} parent=0
    #allocation2 [shape = 'u8[32768]{0}', space=vmem, size = 0x8000, scoped, tag = 'input window, operand 0, single buffered']
    #allocation3 [shape = 's32[1]{0}', space=sflag, size = 0x4, scoped, tag = 'scoped memory for tpu_custom_call.1']
    #allocation4 [shape = 's32[1]{0}', space=sflag, size = 0x4, scoped, tag = 'scoped memory for tpu_custom_call.1']
    #allocation5 [shape = 's32[1]{0}', space=sflag, size = 0x4, scoped, tag = 'scoped memory for tpu_custom_call.1']
    #allocation6 [shape = 'u8[512]{0}', space=smem, size = 0x200, scoped, tag = 'input window, operand 1, single buffered']
    #allocation7 [shape = 'u8[512]{0}', space=smem, size = 0x200, scoped, tag = 'input window, operand 2, single buffered']
    #allocation8 [shape = 's32[1]{0}', space=sflag, size = 0x4, scoped, tag = 'scoped memory for tpu_custom_call.1']
    #allocation9 [shape = 'u8[2048]{0}', space=smem, size = 0x800, scoped, tag = 'input window, operand 3, single buffered']
    #allocation10 [shape = 'u8[512]{0}', space=smem, size = 0x200, scoped, tag = 'input window, operand 4, single buffered']
    #allocation11 [shape = 's32[1]{0}', space=sflag, size = 0x4, scoped, tag = 'scoped memory for tpu_custom_call.1']
    #allocation12 [shape = 'u8[1024]{0}', space=smem, size = 0x400, scoped, tag = 'input window, operand 5, single buffered']
    #allocation13 [shape = 'u8[512]{0}', space=smem, size = 0x200, scoped, tag = 'input window, operand 6, single buffered']
    #allocation14 [shape = 's32[1]{0}', space=sflag, size = 0x4, scoped, tag = 'scoped memory for tpu_custom_call.1']
    #allocation15 [shape = 'u8[4096]{0}', space=vmem, size = 0x1000, scoped, tag = 'output window, operand 0, single buffered']
    %12 = vsyncpa [#allocation3], 0
    %13 = vsyncpa [#allocation5], 0
    %14 = vsyncpa [#allocation8], 0
    %15 = vsyncpa [#allocation11], 0
    %16 = vsyncpa [#allocation14], 0
    %17 = vsyncpa [#allocation4], 0
    // Predicated region
    $region2: #{tpu_custom_call.1} parent=1 // pred_check
      _
    $region3: #{tpu_custom_call.1} parent=1 // pred_check_branch
      %19 = sbr.rel (0) target = $region5
    $region4: #{tpu_custom_call.1} parent=1 // pred_region
      %s21 = ssub.s32 1024, 1024
      %22 = vsyncadd [#allocation3], %s21
      %s23 = sshll.u32 [#allocation2], 4
      %s24 = int_to_ptr.vmem [resolvable:$true] %s23
      %29 = dma.hbm_to_vmem [thread:$0]  %s0, 1024, %s24, [#allocation3], 128, 128, 8
    $region5: #{tpu_custom_call.1} parent=1 // pred_fallthru
      _
    // Predicated region
    $region6: #{tpu_custom_call.1} parent=1 // pred_check
      _
    $region7: #{tpu_custom_call.1} parent=1 // pred_check_branch
      %31 = sbr.rel (0) target = $region9
    $region8: #{tpu_custom_call.1} parent=1 // pred_region
      %s33 = ssub.s32 16, 16
      %34 = vsyncadd [#allocation5], %s33
      %s36 = sshll.u32 %s1, 4
      %s37 = int_to_ptr.vmem [resolvable:$true] %s36
      %39 = dma.vmem_to_smem %s37, 16, [#allocation6], [#allocation5]
    $region9: #{tpu_custom_call.1} parent=1 // pred_fallthru
      _
    // Predicated region
    $region10: #{tpu_custom_call.1} parent=1 // pred_check
      _
    $region11: #{tpu_custom_call.1} parent=1 // pred_check_branch
      %41 = sbr.rel (0) target = $region13
    $region12: #{tpu_custom_call.1} parent=1 // pred_region
      %s43 = ssub.s32 16, 16
      %44 = vsyncadd [#allocation8], %s43
      %s46 = sshll.u32 %s2, 4
      %s47 = int_to_ptr.vmem [resolvable:$true] %s46
      %49 = dma.vmem_to_smem %s47, 16, [#allocation7], [#allocation8]
    $region13: #{tpu_custom_call.1} parent=1 // pred_fallthru
      _
    // Predicated region
    $region14: #{tpu_custom_call.1} parent=1 // pred_check
      _
    $region15: #{tpu_custom_call.1} parent=1 // pred_check_branch
      %51 = sbr.rel (0) target = $region17
    $region16: #{tpu_custom_call.1} parent=1 // pred_region
      %s53 = ssub.s32 64, 64
      %54 = vsyncadd [#allocation8], %s53
      %s56 = sshll.u32 %s3, 4
      %s57 = int_to_ptr.vmem [resolvable:$true] %s56
      %59 = dma.vmem_to_smem %s57, 64, [#allocation9], [#allocation8]
    $region17: #{tpu_custom_call.1} parent=1 // pred_fallthru
      _
    // Predicated region
    $region18: #{tpu_custom_call.1} parent=1 // pred_check
      _
    $region19: #{tpu_custom_call.1} parent=1 // pred_check_branch
      %61 = sbr.rel (0) target = $region21
    $region20: #{tpu_custom_call.1} parent=1 // pred_region
      %s63 = ssub.s32 16, 16
      %64 = vsyncadd [#allocation11], %s63
      %s66 = sshll.u32 %s4, 4
      %s67 = int_to_ptr.vmem [resolvable:$true] %s66
      %69 = dma.vmem_to_smem %s67, 16, [#allocation10], [#allocation11]
    $region21: #{tpu_custom_call.1} parent=1 // pred_fallthru
      _
    // Predicated region
    $region22: #{tpu_custom_call.1} parent=1 // pred_check
      _
    $region23: #{tpu_custom_call.1} parent=1 // pred_check_branch
      %71 = sbr.rel (0) target = $region25
    $region24: #{tpu_custom_call.1} parent=1 // pred_region
      %s73 = ssub.s32 32, 32
      %74 = vsyncadd [#allocation11], %s73
      %s76 = sshll.u32 %s5, 4
      %s77 = int_to_ptr.vmem [resolvable:$true] %s76
      %79 = dma.vmem_to_smem %s77, 32, [#allocation12], [#allocation11]
    $region25: #{tpu_custom_call.1} parent=1 // pred_fallthru
      _
    // Predicated region
    $region26: #{tpu_custom_call.1} parent=1 // pred_check
      _
    $region27: #{tpu_custom_call.1} parent=1 // pred_check_branch
      %81 = sbr.rel (0) target = $region29
    $region28: #{tpu_custom_call.1} parent=1 // pred_region
      %s83 = ssub.s32 16, 16
      %84 = vsyncadd [#allocation14], %s83
      %s86 = sshll.u32 %s6, 4
      %s87 = int_to_ptr.vmem [resolvable:$true] %s86
      %89 = dma.vmem_to_smem %s87, 16, [#allocation13], [#allocation14]
    $region29: #{tpu_custom_call.1} parent=1 // pred_fallthru
      _
    // Predicated region
    $region30: #{tpu_custom_call.1} parent=1 // pred_check
      _
    $region31: #{tpu_custom_call.1} parent=1 // pred_check_branch
      %91 = sbr.rel (0) target = $region33
    $region32: #{tpu_custom_call.1} parent=1 // pred_region
      %92 = dma.done [#allocation3], 1024
    $region33: #{tpu_custom_call.1} parent=1 // pred_fallthru
      _
    // Predicated region
    $region34: #{tpu_custom_call.1} parent=1 // pred_check
      _
    $region35: #{tpu_custom_call.1} parent=1 // pred_check_branch
      %94 = sbr.rel (0) target = $region37
    $region36: #{tpu_custom_call.1} parent=1 // pred_region
      %95 = dma.done [#allocation5], 16
    $region37: #{tpu_custom_call.1} parent=1 // pred_fallthru
      _
    // Predicated region
    $region38: #{tpu_custom_call.1} parent=1 // pred_check
      _
    $region39: #{tpu_custom_call.1} parent=1 // pred_check_branch
      %97 = sbr.rel (0) target = $region41
    $region40: #{tpu_custom_call.1} parent=1 // pred_region
      %98 = dma.done [#allocation8], 16
    $region41: #{tpu_custom_call.1} parent=1 // pred_fallthru
      _
    // Predicated region
    $region42: #{tpu_custom_call.1} parent=1 // pred_check
      _
    $region43: #{tpu_custom_call.1} parent=1 // pred_check_branch
      %100 = sbr.rel (0) target = $region45
    $region44: #{tpu_custom_call.1} parent=1 // pred_region
      %101 = dma.done [#allocation8], 64
    $region45: #{tpu_custom_call.1} parent=1 // pred_fallthru
      _
    // Predicated region
    $region46: #{tpu_custom_call.1} parent=1 // pred_check
      _
    $region47: #{tpu_custom_call.1} parent=1 // pred_check_branch
      %103 = sbr.rel (0) target = $region49
    $region48: #{tpu_custom_call.1} parent=1 // pred_region
      %104 = dma.done [#allocation11], 16
    $region49: #{tpu_custom_call.1} parent=1 // pred_fallthru
      _
    // Predicated region
    $region50: #{tpu_custom_call.1} parent=1 // pred_check
      _
    $region51: #{tpu_custom_call.1} parent=1 // pred_check_branch
      %106 = sbr.rel (0) target = $region53
    $region52: #{tpu_custom_call.1} parent=1 // pred_region
      %107 = dma.done [#allocation11], 32
    $region53: #{tpu_custom_call.1} parent=1 // pred_fallthru
      _
    // Predicated region
    $region54: #{tpu_custom_call.1} parent=1 // pred_check
      _
    $region55: #{tpu_custom_call.1} parent=1 // pred_check_branch
      %109 = sbr.rel (0) target = $region57
    $region56: #{tpu_custom_call.1} parent=1 // pred_region
      %110 = dma.done [#allocation14], 16
    $region57: #{tpu_custom_call.1} parent=1 // pred_fallthru
      _
    %111 = sfence
    %v112 = vld [vmem:[#allocation2] sm:$0xff]
    %s113 = sld [smem:[#allocation6]]
    %v114 = vstv %s113
    %v115 = vmul.f32 %v112, %v114
    %s116 = sld [smem:[#allocation7]]
    %v117 = vstv %s116
    %v118 = vadd.f32 %v115, %v117
    %s119 = scalar_lea.vmem [#allocation2], 8
    %v120 = vld [vmem:[%s119] sm:$0xff]
    %s121 = sld [smem:[#allocation6 + $0x1]]
    %v122 = vstv %s121
    %v123 = vmul.f32 %v120, %v122
    %s124 = sld [smem:[#allocation7 + $0x1]]
    %v125 = vstv %s124
    %v126 = vadd.f32 %v123, %v125
    %s127 = scalar_lea.vmem [#allocation2], 16
    %v128 = vld [vmem:[%s127] sm:$0xff]
    %s129 = sld [smem:[#allocation6 + $0x2]]
    %v130 = vstv %s129
    %v131 = vmul.f32 %v128, %v130
    %s132 = sld [smem:[#allocation7 + $0x2]]
    %v133 = vstv %s132
    %v134 = vadd.f32 %v131, %v133
    %s135 = scalar_lea.vmem [#allocation2], 32
    %v136 = vld [vmem:[%s135] sm:$0xff]
    %s137 = sld [smem:[#allocation6 + $0x4]]
    %v138 = vstv %s137
    %v139 = vmul.f32 %v136, %v138
    %s140 = sld [smem:[#allocation7 + $0x4]]
    %v141 = vstv %s140
    %v142 = vadd.f32 %v139, %v141
    %s143 = scalar_lea.vmem [#allocation2], 40
    %v144 = vld [vmem:[%s143] sm:$0xff]
    %s145 = sld [smem:[#allocation6 + $0x5]]
    %v146 = vstv %s145
    %v147 = vmul.f32 %v144, %v146
    %s148 = sld [smem:[#allocation7 + $0x5]]
    %v149 = vstv %s148
    %v150 = vadd.f32 %v147, %v149
    %s151 = scalar_lea.vmem [#allocation2], 48
    %v152 = vld [vmem:[%s151] sm:$0xff]
    %vm153 = vcmp.ge.f32.partialorder %v150, 0.25
    %v154 = vsel %vm153, 1.0, 0.0
    %vm155 = vcmp.ge.f32.partialorder %v126, 0.2
    %v156 = vsel %vm155, %v126, 0.0
    %v157 = vmul.f32 %v156, %v154
    %vm158 = vcmp.ge.f32.partialorder %v134, 0.2
    %v159 = vsel %vm158, %v134, 0.0
    %v160 = vmul.f32 %v159, %v154
    %vm161 = vcmp.ge.f32.partialorder %v118, 0.2
    %v162 = vsel %vm161, %v118, 0.0
    %v163 = vmul.f32 %v162, %v154
    %s164 = sld [smem:[#allocation10]]
    %s165 = ssub.f32 1.0, %s164
    %s166 = sld [smem:[#allocation9]]
    %v167 = vstv %s166
    %v168 = vmul.f32 %v167, %v152
    %v169 = vstv %s165
    %v170 = vadd.f32 %v169, %v168
    %s171 = sld [smem:[#allocation9 + $0x1]]
    %v172 = vstv %s171
    %v173 = vmul.f32 %v172, %v157
    %v174 = vadd.f32 %v170, %v173
    %v175 = vmax.f32 %v174, 0.0
    %v176 = vmin.f32 %v175, 1.0
    %s177 = sld [smem:[#allocation10 + $0x1]]
    %s178 = ssub.f32 1.0, %s177
    %s179 = sld [smem:[#allocation9 + $0x80]]
    %v180 = vstv %s179
    %v181 = vmul.f32 %v180, %v176
    %v182 = vstv %s178
    %v183 = vadd.f32 %v182, %v181
    %s184 = sld [smem:[#allocation9 + $0x81]]
    %v185 = vstv %s184
    %v186 = vmul.f32 %v185, %v160
    %v187 = vadd.f32 %v183, %v186
    %v188 = vmax.f32 %v187, 0.0
    %v189 = vmin.f32 %v188, 1.0
    %s190 = sld [smem:[#allocation10 + $0x2]]
    %s191 = ssub.f32 1.0, %s190
    %s192 = sld [smem:[#allocation9 + $0x100]]
    %v193 = vstv %s192
    %v194 = vmul.f32 %v193, %v189
    %v195 = vstv %s191
    %v196 = vadd.f32 %v195, %v194
    %s197 = sld [smem:[#allocation9 + $0x101]]
    %v198 = vstv %s197
    %v199 = vmul.f32 %v198, %v163
    %v200 = vadd.f32 %v196, %v199
    %v201 = vmax.f32 %v200, 0.0
    %v202 = vmin.f32 %v201, 1.0
    %s203 = sld [smem:[#allocation13]]
    %s204 = sld [smem:[#allocation12]]
    %v205 = vsub.f32 1.0, %v142
    %v206 = vstv %s204
    %v207 = vmul.f32 %v206, %v205
    %v208 = vstv %s203
    %v209 = vsub.f32 %v208, %v207
    %s210 = sld [smem:[#allocation12 + $0x1]]
    %v211 = vsub.f32 1.0, %v202
    %v212 = vstv %s210
    %v213 = vmul.f32 %v212, %v211
    %v214 = vsub.f32 %v209, %v213
    %v215 = vmax.f32 %v214, 0.0
    %v216 = vmin.f32 %v215, 1.0
    %s217 = sld [smem:[#allocation13 + $0x1]]
    %s218 = sld [smem:[#allocation12 + $0x80]]
    %v219 = vsub.f32 1.0, %v216
    %v220 = vstv %s218
    %v221 = vmul.f32 %v220, %v219
    %v222 = vstv %s217
    %v223 = vsub.f32 %v222, %v221
    %s224 = sld [smem:[#allocation12 + $0x81]]
    %v225 = vsub.f32 1.0, %v150
    %v226 = vstv %s224
    %v227 = vmul.f32 %v226, %v225
    %v228 = vsub.f32 %v223, %v227
    %v229 = vmax.f32 %v228, 0.0
    %v230 = vmin.f32 %v229, 1.0
    %231 = vst [vmem:[#allocation15] sm:$0xff] %v230
    // Predicated region
    $region58: #{tpu_custom_call.1} parent=1 // pred_check
      _
    $region59: #{tpu_custom_call.1} parent=1 // pred_check_branch
      %233 = sbr.rel (0) target = $region61
    $region60: #{tpu_custom_call.1} parent=1 // pred_region
      %s235 = ssub.s32 128, 128
      %236 = vsyncadd [#allocation4], %s235
      %s238 = sshll.u32 [#allocation15], 4
      %s239 = int_to_ptr.vmem [resolvable:$true] %s238
      %241 = dma.vmem_to_hbm [thread:$0]  %s239, 128, %s7, [#allocation4]
    $region61: #{tpu_custom_call.1} parent=1 // pred_fallthru
      _
    // Predicated region
    $region62: #{tpu_custom_call.1} parent=1 // pred_check
      _
    $region63: #{tpu_custom_call.1} parent=1 // pred_check_branch
      %243 = sbr.rel (0) target = $region65
    $region64: #{tpu_custom_call.1} parent=1 // pred_region
      %244 = dma.done [#allocation4], 128
    $region65: #{tpu_custom_call.1} parent=1 // pred_fallthru
      _
    %245 = vsyncpa [#allocation3], 1
    %246 = vsyncpa [#allocation4], 1
    %247 = vsyncpa [#allocation5], 1
    %248 = vsyncpa [#allocation8], 1
    %249 = vsyncpa [#allocation11], 1
    %250 = vsyncpa [#allocation14], 1

</llo_original>
